<compile_context>
chip_gen: v5e
topology: v5e:2x2
jax: 0.10.0
libtpu: 0.0.40
codegen_flags: <defaults>
</compile_context>

<pallas_src>
import jax
import jax.numpy as jnp
from jax import lax
from jax.experimental import pallas as pl
from jax.experimental.pallas import tpu as pltpu

LANE = 128
EPS = 1e-5  # matches torch GroupNorm / LayerNorm defaults


def _round_up(x, m):
    return ((x + m - 1) // m) * m


def _gelu(x):
    # TODO(synk): torch uses the exact erf GELU; the tanh approximation is used
    # here (|diff| ~1e-3) because erf lowering is not guaranteed in Mosaic.
    c = jnp.asarray(0.7978845608028654, x.dtype)  # sqrt(2/pi)
    return 0.5 * x * (1.0 + jnp.tanh(c * (x + 0.044715 * x * x * x)))


# --------------------------------------------------------------------------
# conv "cores": produce a (tile_t, c_pad) f32 accumulator for output rows
# [row0, row0 + tile_t) from the space-to-depth-reshaped input x_ref.
# --------------------------------------------------------------------------
def _conv_core_vpu(x_ref, w_ref, row0, *, tile_t, k, s):
    # x_ref: (1, R, s) (C_in == 1), w_ref: (K, C_pad).  K broadcast FMAs (VPU).
    c_pad = w_ref.shape[-1]
    acc = jnp.zeros((tile_t, c_pad), jnp.float32)
    kp = (k - 1) // s + 1
    for d in range(kp):
        xd = x_ref[0, pl.ds(row0 + d, tile_t), :].astype(jnp.float32)  # (TT, s)
        for p in range(s):
            j = d * s + p
            if j < k:
                acc = acc + xd[:, p:p + 1] * w_ref[j:j + 1, :].astype(jnp.float32)
    return acc


def _conv_core_mxu(x_ref, w_ref, row0, *, tile_t, kp):
    # x_ref: (1, R, s*C_in_pad) bf16, w_ref: (KP, s*C_in_pad, C_pad) bf16.
    c_pad = w_ref.shape[-1]
    acc = jnp.zeros((tile_t, c_pad), jnp.float32)
    for d in range(kp):
        xd = x_ref[0, pl.ds(row0 + d, tile_t), :]
        acc = acc + jnp.dot(xd, w_ref[d], preferred_element_type=jnp.float32)
    return acc


def _row_mask(z, row0, tile_t, t_valid):
    gi = row0 + lax.broadcasted_iota(jnp.int32, (tile_t, 1), 0)
    return jnp.where(gi < t_valid, z, 0.0)


# --------------------------------------------------------------------------
# fused kernels (built per layer via closures over the static config)
# --------------------------------------------------------------------------
def _make_plain_kernel(*, use_vpu, tile_t, t_valid, k, s):
    kp = (k - 1) // s + 1

    def kernel(x_ref, w_ref, b_ref, o_ref):
        t = pl.program_id(1)
        row0 = pl.multiple_of(t * tile_t, 8)
        if use_vpu:
            acc = _conv_core_vpu(x_ref, w_ref, row0, tile_t=tile_t, k=k, s=s)
        else:
            acc = _conv_core_mxu(x_ref, w_ref, row0, tile_t=tile_t, kp=kp)
        acc = acc + b_ref[...]
        z = _row_mask(_gelu(acc), row0, tile_t, t_valid)
        o_ref[0] = z.astype(o_ref.dtype)

    return kernel


def _make_layernorm_kernel(*, use_vpu, tile_t, t_valid, k, s, c_real):
    kp = (k - 1) // s + 1

    def kernel(x_ref, w_ref, b_ref, g_ref, bt_ref, o_ref):
        t = pl.program_id(1)
        row0 = pl.multiple_of(t * tile_t, 8)
        if use_vpu:
            acc = _conv_core_vpu(x_ref, w_ref, row0, tile_t=tile_t, k=k, s=s)
        else:
            acc = _conv_core_mxu(x_ref, w_ref, row0, tile_t=tile_t, kp=kp)
        acc = acc + b_ref[...]
        # LayerNorm over the real channels, per time step (f32 math).
        c_pad = acc.shape[-1]
        cmask = lax.broadcasted_iota(jnp.int32, (1, c_pad), 1) < c_real
        inv_n = 1.0 / float(c_real)
        mean = jnp.sum(jnp.where(cmask, acc, 0.0), axis=1, keepdims=True) * inv_n
        diff = jnp.where(cmask, acc - mean, 0.0)
        var = jnp.sum(diff * diff, axis=1, keepdims=True) * inv_n
        z = (acc - mean) * lax.rsqrt(var + EPS) * g_ref[...] + bt_ref[...]
        z = _row_mask(_gelu(z), row0, tile_t, t_valid)
        o_ref[0] = z.astype(o_ref.dtype)

    return kernel


def _make_groupnorm_conv_kernel(*, use_vpu, tile_t, t_valid, k, s):
    kp = (k - 1) // s + 1

    def kernel(x_ref, w_ref, b_ref, y_ref, sum_ref, sq_ref):
        t = pl.program_id(1)
        row0 = pl.multiple_of(t * tile_t, 8)
        if use_vpu:
            acc = _conv_core_vpu(x_ref, w_ref, row0, tile_t=tile_t, k=k, s=s)
        else:
            acc = _conv_core_mxu(x_ref, w_ref, row0, tile_t=tile_t, kp=kp)
        acc = acc + b_ref[...]
        acc = _row_mask(acc, row0, tile_t, t_valid)  # padded rows -> 0
        y_ref[0] = acc.astype(y_ref.dtype)           # bf16 intermediate

        # running per-channel statistics over the full (valid) time axis;
        # stats output block index is constant along the arbitrary t axis.
        @pl.when(t == 0)
        def _():
            sum_ref[...] = jnp.zeros_like(sum_ref)
            sq_ref[...] = jnp.zeros_like(sq_ref)

        sum_ref[0] = sum_ref[0] + jnp.sum(acc, axis=0, keepdims=True)
        sq_ref[0] = sq_ref[0] + jnp.sum(acc * acc, axis=0, keepdims=True)

    return kernel


def _make_groupnorm_finalize_kernel(*, tile_t, t_valid):
    def kernel(y_ref, sum_ref, sq_ref, g_ref, bt_ref, o_ref):
        t = pl.program_id(1)
        row0 = pl.multiple_of(t * tile_t, 8)
        inv_n = 1.0 / float(t_valid)
        mean = sum_ref[0] * inv_n                     # (1, C_pad) f32
        var = sq_ref[0] * inv_n - mean * mean         # biased, like GroupNorm
        scale = lax.rsqrt(var + EPS) * g_ref[...]     # fold gamma in once
        shift = bt_ref[...] - mean * scale
        y = y_ref[0].astype(jnp.float32)
        z = y * scale + shift
        z = _row_mask(_gelu(z), row0, tile_t, t_valid)
        o_ref[0] = z.astype(o_ref.dtype)

    return kernel


# --------------------------------------------------------------------------
# per-layer wrapper
# --------------------------------------------------------------------------
def _conv_layer_forward(x, t_in_valid, p, *, tile_cfg, last):
    """One wav2vec2 conv layer (conv + optional norm + GELU), channels-last."""
    B, t_in_cur, c_in_pad = x.shape
    k, s = p["k"], p["s"]
    kp = (k - 1) // s + 1
    c_pad = p["c_out_pad"]

    t_out_valid = (t_in_valid - k) // s + 1
    tile_t = min(tile_cfg, _round_up(t_out_valid, 8))
    t_out_pad = _round_up(t_out_valid, tile_t)
    n_t = t_out_pad // tile_t

    # pad time so every tile's halo window is in bounds, then the free,
    # contiguous space-to-depth reshape (B, T, C) -> (B, T//s, s*C).
    t_in_needed = s * (t_out_pad + kp - 1)
    t_in_new = _round_up(max(t_in_cur, t_in_needed), s)
    if t_in_new > t_in_cur:
        x = jnp.pad(x, ((0, 0), (0, t_in_new - t_in_cur), (0, 0)))
    r = t_in_new // s
    sc = s * c_in_pad
    xr = x.reshape(B, r, sc)

    out_dtype = jnp.float32 if last else jnp.bfloat16
    w = p["w"]
    bias = p["bias"]

    # rough VMEM budget: resident input + weights + double-buffered tiles.
    est = (2 * r * max(sc, LANE) * xr.dtype.itemsize
           + 2 * int(w.size) * w.dtype.itemsize
           + 6 * tile_t * c_pad * 4)
    vmem_limit = int(min(64 * 2 ** 20, max(32 * 2 ** 20, 3 * est)))

    w_zero = (0,) * w.ndim
    x_spec = pl.BlockSpec((1, r, sc), lambda b, t: (b, 0, 0))
    w_spec = pl.BlockSpec(tuple(w.shape), lambda b, t: w_zero)
    vec_spec = pl.BlockSpec((1, c_pad), lambda b, t: (0, 0))
    stat_spec = pl.BlockSpec((1, 1, c_pad), lambda b, t: (b, 0, 0))
    out_spec = pl.BlockSpec((1, tile_t, c_pad), lambda b, t: (b, t, 0))

    if p["norm"] == "group":
        kern_a = _make_groupnorm_conv_kernel(use_vpu=p["use_vpu"], tile_t=tile_t,
                                             t_valid=t_out_valid, k=k, s=s)
        y_pre, ch_sum, ch_sq = pl.pallas_call(
            kern_a,
            out_shape=(jax.ShapeDtypeStruct((B, t_out_pad, c_pad), jnp.bfloat16),
                       jax.ShapeDtypeStruct((B, 1, c_pad), jnp.float32),
                       jax.ShapeDtypeStruct((B, 1, c_pad), jnp.float32)),
            grid=(B, n_t),
            in_specs=[x_spec, w_spec, vec_spec],
            out_specs=(out_spec, stat_spec, stat_spec),
            compiler_params=pltpu.CompilerParams(
                dimension_semantics=("parallel", "arbitrary"),
                vmem_limit_bytes=vmem_limit),
        )(xr, w, bias)

        kern_b = _make_groupnorm_finalize_kernel(tile_t=tile_t, t_valid=t_out_valid)
        y = pl.pallas_call(
            kern_b,
            out_shape=jax.ShapeDtypeStruct((B, t_out_pad, c_pad), out_dtype),
            grid=(B, n_t),
            in_specs=[out_spec, stat_spec, stat_spec, vec_spec, vec_spec],
            out_specs=out_spec,
            compiler_params=pltpu.CompilerParams(
                dimension_semantics=("parallel", "parallel"),
                vmem_limit_bytes=vmem_limit),
        )(y_pre, ch_sum, ch_sq, p["gamma"], p["beta"])
        return y, t_out_valid

    if p["norm"] == "layer":
        kern = _make_layernorm_kernel(use_vpu=p["use_vpu"], tile_t=tile_t,
                                      t_valid=t_out_valid, k=k, s=s,
                                      c_real=p["c_out"])
        y = pl.pallas_call(
            kern,
            out_shape=jax.ShapeDtypeStruct((B, t_out_pad, c_pad), out_dtype),
            grid=(B, n_t),
            in_specs=[x_spec, w_spec, vec_spec, vec_spec, vec_spec],
            out_specs=out_spec,
            compiler_params=pltpu.CompilerParams(
                dimension_semantics=("parallel", "parallel"),
                vmem_limit_bytes=vmem_limit),
        )(xr, w, bias, p["gamma"], p["beta"])
        return y, t_out_valid

    kern = _make_plain_kernel(use_vpu=p["use_vpu"], tile_t=tile_t,
                              t_valid=t_out_valid, k=k, s=s)
    y = pl.pallas_call(
        kern,
        out_shape=jax.ShapeDtypeStruct((B, t_out_pad, c_pad), out_dtype),
        grid=(B, n_t),
        in_specs=[x_spec, w_spec, vec_spec],
        out_specs=out_spec,
        compiler_params=pltpu.CompilerParams(
            dimension_semantics=("parallel", "parallel"),
            vmem_limit_bytes=vmem_limit),
    )(xr, w, bias)
    return y, t_out_valid


# --------------------------------------------------------------------------
# module
# --------------------------------------------------------------------------
class Wav2Vec2FeatureEncoderPallas:
    """JAX/Pallas reimplementation of Wav2Vec2FeatureEncoder.forward."""

    # TODO(synk): gradient_checkpointing / _freeze_parameters are training-time
    # concerns with no effect on the forward pass; not reproduced here.

    def __init__(self, config, key, tile_t=512):
        self.config = dict(config)
        self.tile_t = _round_up(max(8, tile_t), 8)
        norm_mode = config["feat_extract_norm"]
        n = config["num_feat_extract_layers"]
        self.layers = []
        for layer_id in range(n):
            c_in = 1 if layer_id == 0 else config["conv_dim"][layer_id - 1]
            c_out = config["conv_dim"][layer_id]
            k = config["conv_kernel"][layer_id]
            s = config["conv_stride"][layer_id]
            key, wk, bk = jax.random.split(key, 3)
            # torch Conv1d weight layout: (C_out, C_in, K)
            w_torch = 0.02 * jax.random.normal(wk, (c_out, c_in, k), jnp.float32)
            if config.get("conv_bias", False):
                b_torch = 0.02 * jax.random.normal(bk, (c_out,), jnp.float32)
            else:
                b_torch = jnp.zeros((c_out,), jnp.float32)

            c_in_pad = 1 if layer_id == 0 else _round_up(c_in, LANE)
            c_out_pad = _round_up(c_out, LANE)
            kp = (k - 1) // s + 1
            use_vpu = (c_in == 1)  # tiny contraction -> skip the MXU

            if use_vpu:
                # (K, C_out_pad) f32, row j = W[:, 0, j]
                w_kernel = jnp.zeros((k, c_out_pad), jnp.float32)
                w_kernel = w_kernel.at[:, :c_out].set(
                    jnp.transpose(w_torch[:, 0, :], (1, 0)))
            else:
                # space-to-depth weights: (KP, s*C_in_pad, C_out_pad), bf16
                w_full = jnp.zeros((kp * s, c_in_pad, c_out_pad), jnp.float32)
                w_full = w_full.at[:k, :c_in, :c_out].set(
                    jnp.transpose(w_torch, (2, 1, 0)))
                w_kernel = w_full.reshape(kp, s * c_in_pad, c_out_pad).astype(
                    jnp.bfloat16)

            bias = jnp.zeros((1, c_out_pad), jnp.float32).at[0, :c_out].set(b_torch)

            if norm_mode == "group":
                norm = "group" if layer_id == 0 else "none"
            elif norm_mode == "layer":
                norm = "layer"
            else:
                raise ValueError(norm_mode)

            gamma_t = jnp.ones((c_out,), jnp.float32)
            beta_t = jnp.zeros((c_out,), jnp.float32)
            gamma = jnp.zeros((1, c_out_pad), jnp.float32).at[0, :c_out].set(gamma_t)
            beta = jnp.zeros((1, c_out_pad), jnp.float32).at[0, :c_out].set(beta_t)

            self.layers.append(dict(
                k=k, s=s, c_in=c_in, c_out=c_out, c_in_pad=c_in_pad,
                c_out_pad=c_out_pad, use_vpu=use_vpu, norm=norm,
                w=w_kernel, bias=bias, gamma=gamma, beta=beta,
                w_torch=w_torch, b_torch=b_torch,
                gamma_t=gamma_t, beta_t=beta_t))

    def __call__(self, input_values):
        # input_values: (B, T) raw waveform; torch does input_values[:, None]
        # -> (B, 1, T); the channels-last equivalent is (B, T, 1).
        x = input_values[:, :, None].astype(jnp.float32)
        t_valid = input_values.shape[1]
        n = len(self.layers)
        for i, p in enumerate(self.layers):
            x, t_valid = _conv_layer_forward(
                x, t_valid, p, tile_cfg=self.tile_t, last=(i == n - 1))
        c_out = self.layers[-1]["c_out"]
        # strip channel/time padding and return torch layout (B, C, T).  The
        # final transpose touches only the smallest tensor in the pipeline.
        x = x[:, :t_valid, :c_out].astype(jnp.float32)
        return jnp.transpose(x, (0, 2, 1))


# --------------------------------------------------------------------------
# plain-JAX reference (f32) for correctness checking
# --------------------------------------------------------------------------
def _reference_encoder(input_values, layers):
    h = input_values[:, :, None].astype(jnp.float32)  # (B, T, 1)
    for p in layers:
        k, s = p["k"], p["s"]
        w, b = p["w_torch"], p["b_torch"]
        t_out = (h.shape[1] - k) // s + 1
        idx = jnp.arange(t_out)[:, None] * s + jnp.arange(k)[None, :]
        patches = h[:, idx, :]                         # (B, T_out, K, C_in)
        y = jnp.einsum("btkc,ock->bto", patches, w,
                       precision=lax.Precision.HIGHEST) + b[None, None, :]
        if p["norm"] == "group":
            mean = jnp.mean(y, axis=1, keepdims=True)
            var = jnp.mean((y - mean) ** 2, axis=1, keepdims=True)
            y = (y - mean) * lax.rsqrt(var + EPS) * p["gamma_t"] + p["beta_t"]
        elif p["norm"] == "layer":
            mean = jnp.mean(y, axis=2, keepdims=True)
            var = jnp.mean((y - mean) ** 2, axis=2, keepdims=True)
            y = (y - mean) * lax.rsqrt(var + EPS) * p["gamma_t"] + p["beta_t"]
        h = _gelu(y)
    return jnp.transpose(h, (0, 2, 1))


# --------------------------------------------------------------------------
# main
# --------------------------------------------------------------------------
if __name__ == "__main__":
    key = jax.random.PRNGKey(0)

    # ---- group-norm config (default wav2vec2 feature-extractor structure) ----
    config_group = dict(
        conv_dim=(32, 32, 32),
        conv_kernel=(10, 3, 2),
        conv_stride=(5, 2, 2),
        num_feat_extract_layers=3,
        feat_extract_norm="group",
        feat_extract_activation="gelu",
        conv_bias=False,
    )
    key, k_enc, k_x = jax.random.split(key, 3)
    batch, seq = 2, 500
    wave = jax.random.normal(k_x, (batch, seq), jnp.float32)
    enc = Wav2Vec2FeatureEncoderPallas(config_group, k_enc, tile_t=32)
    out = jax.block_until_ready(enc(wave))

    t = seq
    for kk, ss in zip(config_group["conv_kernel"], config_group["conv_stride"]):
        t = (t - kk) // ss + 1
    assert out.shape == (batch, config_group["conv_dim"][-1], t), out.shape
    assert bool(jnp.all(jnp.isfinite(out)))
    ref = _reference_encoder(wave, enc.layers)
    err = float(jnp.max(jnp.abs(out - ref)))
    assert err < 0.2, f"group-config mismatch vs reference: {err}"

    # ---- layer-norm config (exercises LayerNorm + conv_bias path) ----
    config_layer = dict(
        conv_dim=(16, 16),
        conv_kernel=(10, 3),
        conv_stride=(5, 2),
        num_feat_extract_layers=2,
        feat_extract_norm="layer",
        feat_extract_activation="gelu",
        conv_bias=True,
    )
    key, k_enc2, k_x2 = jax.random.split(key, 3)
    wave2 = jax.random.normal(k_x2, (2, 300), jnp.float32)
    enc2 = Wav2Vec2FeatureEncoderPallas(config_layer, k_enc2, tile_t=32)
    out2 = jax.block_until_ready(enc2(wave2))
    t2 = 300
    for kk, ss in zip(config_layer["conv_kernel"], config_layer["conv_stride"]):
        t2 = (t2 - kk) // ss + 1
    assert out2.shape == (2, config_layer["conv_dim"][-1], t2), out2.shape
    assert bool(jnp.all(jnp.isfinite(out2)))
    ref2 = _reference_encoder(wave2, enc2.layers)
    err2 = float(jnp.max(jnp.abs(out2 - ref2)))
    assert err2 < 0.2, f"layer-config mismatch vs reference: {err2}"

    print("KERNEL_OK")
</pallas_src>

<mosaic_0001>
module attributes {stable_mosaic.version = 11 : i64} {
  func.func @kernel(%arg0: i32, %arg1: i32, %arg2: memref<1x129x5xf32, #tpu.memory_space<vmem>>, %arg3: memref<10x128xf32, #tpu.memory_space<vmem>>, %arg4: memref<1x128xf32, #tpu.memory_space<vmem>>, %arg5: memref<1x32x128xbf16, #tpu.memory_space<vmem>>, %arg6: memref<1x1x128xf32, #tpu.memory_space<vmem>>, %arg7: memref<1x1x128xf32, #tpu.memory_space<vmem>>) attributes {dimension_semantics = [#tpu.dimension_semantics<parallel>, #tpu.dimension_semantics<arbitrary>], iteration_bounds = array<i64: 2, 4>, scalar_prefetch = 0 : i64, scratch_operands = 0 : i64, tpu.core_type = #tpu.core_type<tc>, window_params = [{transform_indices = @transform_0, window_bounds = array<i64: 1, 129, 5>}, {pipeline_mode = #tpu.pipeline_mode<synchronous>, transform_indices = @transform_1, window_bounds = array<i64: 10, 128>}, {pipeline_mode = #tpu.pipeline_mode<synchronous>, transform_indices = @transform_2, window_bounds = array<i64: 1, 128>}, {transform_indices = @transform_3, window_bounds = array<i64: 1, 32, 128>}, {transform_indices = @transform_4, window_bounds = array<i64: 1, 1, 128>}, {transform_indices = @transform_5, window_bounds = array<i64: 1, 1, 128>}]} {
    %c32_i32 = arith.constant 32 : i32
    %0 = arith.muli %arg1, %c32_i32 : i32
    %1 = tpu.assume_multiple %0, 8 : i32
    %cst = arith.constant 0.000000e+00 : f32
    %2 = vector.broadcast %cst : f32 to vector<32x128xf32>
    %c0_i32 = arith.constant 0 : i32
    %3 = arith.addi %1, %c0_i32 : i32
    %c0 = arith.constant 0 : index
    %4 = arith.index_cast %3 : i32 to index
    %c0_0 = arith.constant 0 : index
    %5 = vector.load %arg2[%c0, %4, %c0_0] : memref<1x129x5xf32, #tpu.memory_space<vmem>>, vector<1x32x5xf32>
    %6 = vector.shape_cast %5 : vector<1x32x5xf32> to vector<32x5xf32>
    %7 = vector.extract_strided_slice %6 {offsets = [0, 0], sizes = [32, 1], strides = [1, 1]} : vector<32x5xf32> to vector<32x1xf32>
    %c0_1 = arith.constant 0 : index
    %c0_2 = arith.constant 0 : index
    %8 = vector.load %arg3[%c0_1, %c0_2] : memref<10x128xf32, #tpu.memory_space<vmem>>, vector<1x128xf32>
    %9 = vector.broadcast %7 : vector<32x1xf32> to vector<32x128xf32>
    %10 = vector.broadcast %8 : vector<1x128xf32> to vector<32x128xf32>
    %11 = arith.mulf %9, %10 : vector<32x128xf32>
    %12 = arith.addf %2, %11 : vector<32x128xf32>
    %13 = vector.extract_strided_slice %6 {offsets = [0, 1], sizes = [32, 1], strides = [1, 1]} : vector<32x5xf32> to vector<32x1xf32>
    %c1 = arith.constant 1 : index
    %c0_3 = arith.constant 0 : index
    %14 = vector.load %arg3[%c1, %c0_3] : memref<10x128xf32, #tpu.memory_space<vmem>>, vector<1x128xf32>
    %15 = vector.broadcast %13 : vector<32x1xf32> to vector<32x128xf32>
    %16 = vector.broadcast %14 : vector<1x128xf32> to vector<32x128xf32>
    %17 = arith.mulf %15, %16 : vector<32x128xf32>
    %18 = arith.addf %12, %17 : vector<32x128xf32>
    %19 = vector.extract_strided_slice %6 {offsets = [0, 2], sizes = [32, 1], strides = [1, 1]} : vector<32x5xf32> to vector<32x1xf32>
    %c2 = arith.constant 2 : index
    %c0_4 = arith.constant 0 : index
    %20 = vector.load %arg3[%c2, %c0_4] : memref<10x128xf32, #tpu.memory_space<vmem>>, vector<1x128xf32>
    %21 = vector.broadcast %19 : vector<32x1xf32> to vector<32x128xf32>
    %22 = vector.broadcast %20 : vector<1x128xf32> to vector<32x128xf32>
    %23 = arith.mulf %21, %22 : vector<32x128xf32>
    %24 = arith.addf %18, %23 : vector<32x128xf32>
    %25 = vector.extract_strided_slice %6 {offsets = [0, 3], sizes = [32, 1], strides = [1, 1]} : vector<32x5xf32> to vector<32x1xf32>
    %c3 = arith.constant 3 : index
    %c0_5 = arith.constant 0 : index
    %26 = vector.load %arg3[%c3, %c0_5] : memref<10x128xf32, #tpu.memory_space<vmem>>, vector<1x128xf32>
    %27 = vector.broadcast %25 : vector<32x1xf32> to vector<32x128xf32>
    %28 = vector.broadcast %26 : vector<1x128xf32> to vector<32x128xf32>
    %29 = arith.mulf %27, %28 : vector<32x128xf32>
    %30 = arith.addf %24, %29 : vector<32x128xf32>
    %31 = vector.extract_strided_slice %6 {offsets = [0, 4], sizes = [32, 1], strides = [1, 1]} : vector<32x5xf32> to vector<32x1xf32>
    %c4 = arith.constant 4 : index
    %c0_6 = arith.constant 0 : index
    %32 = vector.load %arg3[%c4, %c0_6] : memref<10x128xf32, #tpu.memory_space<vmem>>, vector<1x128xf32>
    %33 = vector.broadcast %31 : vector<32x1xf32> to vector<32x128xf32>
    %34 = vector.broadcast %32 : vector<1x128xf32> to vector<32x128xf32>
    %35 = arith.mulf %33, %34 : vector<32x128xf32>
    %36 = arith.addf %30, %35 : vector<32x128xf32>
    %c1_i32 = arith.constant 1 : i32
    %37 = arith.addi %1, %c1_i32 : i32
    %c0_7 = arith.constant 0 : index
    %38 = arith.index_cast %37 : i32 to index
    %c0_8 = arith.constant 0 : index
    %39 = vector.load %arg2[%c0_7, %38, %c0_8] : memref<1x129x5xf32, #tpu.memory_space<vmem>>, vector<1x32x5xf32>
    %40 = vector.shape_cast %39 : vector<1x32x5xf32> to vector<32x5xf32>
    %41 = vector.extract_strided_slice %40 {offsets = [0, 0], sizes = [32, 1], strides = [1, 1]} : vector<32x5xf32> to vector<32x1xf32>
    %c5 = arith.constant 5 : index
    %c0_9 = arith.constant 0 : index
    %42 = vector.load %arg3[%c5, %c0_9] : memref<10x128xf32, #tpu.memory_space<vmem>>, vector<1x128xf32>
    %43 = vector.broadcast %41 : vector<32x1xf32> to vector<32x128xf32>
    %44 = vector.broadcast %42 : vector<1x128xf32> to vector<32x128xf32>
    %45 = arith.mulf %43, %44 : vector<32x128xf32>
    %46 = arith.addf %36, %45 : vector<32x128xf32>
    %47 = vector.extract_strided_slice %40 {offsets = [0, 1], sizes = [32, 1], strides = [1, 1]} : vector<32x5xf32> to vector<32x1xf32>
    %c6 = arith.constant 6 : index
    %c0_10 = arith.constant 0 : index
    %48 = vector.load %arg3[%c6, %c0_10] : memref<10x128xf32, #tpu.memory_space<vmem>>, vector<1x128xf32>
    %49 = vector.broadcast %47 : vector<32x1xf32> to vector<32x128xf32>
    %50 = vector.broadcast %48 : vector<1x128xf32> to vector<32x128xf32>
    %51 = arith.mulf %49, %50 : vector<32x128xf32>
    %52 = arith.addf %46, %51 : vector<32x128xf32>
    %53 = vector.extract_strided_slice %40 {offsets = [0, 2], sizes = [32, 1], strides = [1, 1]} : vector<32x5xf32> to vector<32x1xf32>
    %c7 = arith.constant 7 : index
    %c0_11 = arith.constant 0 : index
    %54 = vector.load %arg3[%c7, %c0_11] : memref<10x128xf32, #tpu.memory_space<vmem>>, vector<1x128xf32>
    %55 = vector.broadcast %53 : vector<32x1xf32> to vector<32x128xf32>
    %56 = vector.broadcast %54 : vector<1x128xf32> to vector<32x128xf32>
    %57 = arith.mulf %55, %56 : vector<32x128xf32>
    %58 = arith.addf %52, %57 : vector<32x128xf32>
    %59 = vector.extract_strided_slice %40 {offsets = [0, 3], sizes = [32, 1], strides = [1, 1]} : vector<32x5xf32> to vector<32x1xf32>
    %c8 = arith.constant 8 : index
    %c0_12 = arith.constant 0 : index
    %60 = vector.load %arg3[%c8, %c0_12] : memref<10x128xf32, #tpu.memory_space<vmem>>, vector<1x128xf32>
    %61 = vector.broadcast %59 : vector<32x1xf32> to vector<32x128xf32>
    %62 = vector.broadcast %60 : vector<1x128xf32> to vector<32x128xf32>
    %63 = arith.mulf %61, %62 : vector<32x128xf32>
    %64 = arith.addf %58, %63 : vector<32x128xf32>
    %65 = vector.extract_strided_slice %40 {offsets = [0, 4], sizes = [32, 1], strides = [1, 1]} : vector<32x5xf32> to vector<32x1xf32>
    %c9 = arith.constant 9 : index
    %c0_13 = arith.constant 0 : index
    %66 = vector.load %arg3[%c9, %c0_13] : memref<10x128xf32, #tpu.memory_space<vmem>>, vector<1x128xf32>
    %67 = vector.broadcast %65 : vector<32x1xf32> to vector<32x128xf32>
    %68 = vector.broadcast %66 : vector<1x128xf32> to vector<32x128xf32>
    %69 = arith.mulf %67, %68 : vector<32x128xf32>
    %70 = arith.addf %64, %69 : vector<32x128xf32>
    %c0_14 = arith.constant 0 : index
    %c0_15 = arith.constant 0 : index
    %71 = vector.load %arg4[%c0_14, %c0_15] : memref<1x128xf32, #tpu.memory_space<vmem>>, vector<1x128xf32>
    %72 = vector.broadcast %71 : vector<1x128xf32> to vector<32x128xf32>
    %73 = arith.addf %70, %72 : vector<32x128xf32>
    %74 = tpu.iota {dimensions = array<i32: 0>} : vector<32x1xi32>
    %75 = vector.broadcast %1 : i32 to vector<32x1xi32>
    %76 = arith.addi %75, %74 : vector<32x1xi32>
    %c99_i32 = arith.constant 99 : i32
    %77 = vector.broadcast %c99_i32 : i32 to vector<32x1xi32>
    %78 = arith.cmpi slt, %76, %77 : vector<32x1xi32>
    %cst_16 = arith.constant 0.000000e+00 : f32
    %79 = vector.shape_cast %78 : vector<32x1xi1> to vector<32x1xi1>
    %80 = vector.broadcast %79 : vector<32x1xi1> to vector<32x128xi1>
    %81 = vector.broadcast %cst_16 : f32 to vector<32x128xf32>
    %82 = arith.select %80, %73, %81 : vector<32x128xi1>, vector<32x128xf32>
    %83 = arith.truncf %82 : vector<32x128xf32> to vector<32x128xbf16>
    %c0_17 = arith.constant 0 : index
    %c0_18 = arith.constant 0 : index
    %c0_19 = arith.constant 0 : index
    %84 = vector.load %arg5[%c0_17, %c0_18, %c0_19] : memref<1x32x128xbf16, #tpu.memory_space<vmem>>, vector<1x32x128xbf16>
    %85 = vector.shape_cast %84 : vector<1x32x128xbf16> to vector<32x128xbf16>
    %86 = vector.shape_cast %83 : vector<32x128xbf16> to vector<1x32x128xbf16>
    tpu.vector_store %arg5[%c0_17, %c0_18, %c0_19], %86 {strides = array<i32>} : memref<1x32x128xbf16, #tpu.memory_space<vmem>>, vector<1x32x128xbf16>,
    %c0_i32_20 = arith.constant 0 : i32
    %87 = arith.cmpi eq, %arg1, %c0_i32_20 : i32
    %88 = arith.extui %87 : i1 to i32
    %c0_i32_21 = arith.constant 0 : i32
    %89 = arith.cmpi ne, %88, %c0_i32_21 : i32
    scf.if %89 {
      %cst_36 = arith.constant 0.000000e+00 : f32
      %107 = vector.broadcast %cst_36 : f32 to vector<1x1x128xf32>
      %c0_37 = arith.constant 0 : index
      %c0_38 = arith.constant 0 : index
      %c0_39 = arith.constant 0 : index
      %108 = vector.load %arg6[%c0_37, %c0_38, %c0_39] : memref<1x1x128xf32, #tpu.memory_space<vmem>>, vector<1x1x128xf32>
      tpu.vector_store %arg6[%c0_37, %c0_38, %c0_39], %107 {strides = array<i32>} : memref<1x1x128xf32, #tpu.memory_space<vmem>>, vector<1x1x128xf32>,
      %cst_40 = arith.constant 0.000000e+00 : f32
      %109 = vector.broadcast %cst_40 : f32 to vector<1x1x128xf32>
      %c0_41 = arith.constant 0 : index
      %c0_42 = arith.constant 0 : index
      %c0_43 = arith.constant 0 : index
      %110 = vector.load %arg7[%c0_41, %c0_42, %c0_43] : memref<1x1x128xf32, #tpu.memory_space<vmem>>, vector<1x1x128xf32>
      tpu.vector_store %arg7[%c0_41, %c0_42, %c0_43], %109 {strides = array<i32>} : memref<1x1x128xf32, #tpu.memory_space<vmem>>, vector<1x1x128xf32>,
    } else {
    }
    %c0_22 = arith.constant 0 : index
    %c0_23 = arith.constant 0 : index
    %c0_24 = arith.constant 0 : index
    %90 = vector.load %arg6[%c0_22, %c0_23, %c0_24] : memref<1x1x128xf32, #tpu.memory_space<vmem>>, vector<1x1x128xf32>
    %91 = vector.shape_cast %90 : vector<1x1x128xf32> to vector<1x128xf32>
    %cst_25 = arith.constant dense<0.000000e+00> : vector<128xf32>
    %92 = vector.multi_reduction <add>, %82, %cst_25 [0] : vector<32x128xf32> to vector<128xf32>
    %93 = vector.shape_cast %92 : vector<128xf32> to vector<1x128xf32>
    %94 = arith.addf %91, %93 : vector<1x128xf32>
    %c0_26 = arith.constant 0 : index
    %c0_27 = arith.constant 0 : index
    %c0_28 = arith.constant 0 : index
    %95 = vector.load %arg6[%c0_26, %c0_27, %c0_28] : memref<1x1x128xf32, #tpu.memory_space<vmem>>, vector<1x1x128xf32>
    %96 = vector.shape_cast %95 : vector<1x1x128xf32> to vector<1x128xf32>
    %97 = vector.shape_cast %94 : vector<1x128xf32> to vector<1x1x128xf32>
    tpu.vector_store %arg6[%c0_26, %c0_27, %c0_28], %97 {strides = array<i32>} : memref<1x1x128xf32, #tpu.memory_space<vmem>>, vector<1x1x128xf32>,
    %c0_29 = arith.constant 0 : index
    %c0_30 = arith.constant 0 : index
    %c0_31 = arith.constant 0 : index
    %98 = vector.load %arg7[%c0_29, %c0_30, %c0_31] : memref<1x1x128xf32, #tpu.memory_space<vmem>>, vector<1x1x128xf32>
    %99 = vector.shape_cast %98 : vector<1x1x128xf32> to vector<1x128xf32>
    %100 = arith.mulf %82, %82 : vector<32x128xf32>
    %cst_32 = arith.constant dense<0.000000e+00> : vector<128xf32>
    %101 = vector.multi_reduction <add>, %100, %cst_32 [0] : vector<32x128xf32> to vector<128xf32>
    %102 = vector.shape_cast %101 : vector<128xf32> to vector<1x128xf32>
    %103 = arith.addf %99, %102 : vector<1x128xf32>
    %c0_33 = arith.constant 0 : index
    %c0_34 = arith.constant 0 : index
    %c0_35 = arith.constant 0 : index
    %104 = vector.load %arg7[%c0_33, %c0_34, %c0_35] : memref<1x1x128xf32, #tpu.memory_space<vmem>>, vector<1x1x128xf32>
    %105 = vector.shape_cast %104 : vector<1x1x128xf32> to vector<1x128xf32>
    %106 = vector.shape_cast %103 : vector<1x128xf32> to vector<1x1x128xf32>
    tpu.vector_store %arg7[%c0_33, %c0_34, %c0_35], %106 {strides = array<i32>} : memref<1x1x128xf32, #tpu.memory_space<vmem>>, vector<1x1x128xf32>,
    return
  }
  func.func @transform_0(%arg0: i32, %arg1: i32) -> (i32, i32, i32) {
    %c0_i32 = arith.constant 0 : i32
    %c0_i32_0 = arith.constant 0 : i32
    %c0_i32_1 = arith.constant 0 : i32
    return %arg0, %c0_i32, %c0_i32_0 : i32, i32, i32
  }
  func.func @transform_1(%arg0: i32, %arg1: i32) -> (i32, i32) {
    %c0_i32 = arith.constant 0 : i32
    %c0_i32_0 = arith.constant 0 : i32
    %c0_i32_1 = arith.constant 0 : i32
    return %c0_i32, %c0_i32_0 : i32, i32
  }
  func.func @transform_2(%arg0: i32, %arg1: i32) -> (i32, i32) {
    %c0_i32 = arith.constant 0 : i32
    %c0_i32_0 = arith.constant 0 : i32
    %c0_i32_1 = arith.constant 0 : i32
    return %c0_i32, %c0_i32_0 : i32, i32
  }
  func.func @transform_3(%arg0: i32, %arg1: i32) -> (i32, i32, i32) {
    %c0_i32 = arith.constant 0 : i32
    %c0_i32_0 = arith.constant 0 : i32
    return %arg0, %arg1, %c0_i32 : i32, i32, i32
  }
  func.func @transform_4(%arg0: i32, %arg1: i32) -> (i32, i32, i32) {
    %c0_i32 = arith.constant 0 : i32
    %c0_i32_0 = arith.constant 0 : i32
    %c0_i32_1 = arith.constant 0 : i32
    return %arg0, %c0_i32, %c0_i32_0 : i32, i32, i32
  }
  func.func @transform_5(%arg0: i32, %arg1: i32) -> (i32, i32, i32) {
    %c0_i32 = arith.constant 0 : i32
    %c0_i32_0 = arith.constant 0 : i32
    %c0_i32_1 = arith.constant 0 : i32
    return %arg0, %c0_i32, %c0_i32_0 : i32, i32, i32
  }
}

</mosaic_0001>

<llo_original>
// kernel: tpu_custom_call.1
$region0: #{tpu_custom_call.1}
  #allocation0 [shape = 'u32[]', space=smem, size = 0x4, offset = 0x4, fixed_abs, tag = 'smem constant byte address 0x4 - core index']
  #allocation1 [shape = 'u32[72,128]{1,0:T(1,128)}', space=vmem, size = 0x9000, scoped, tag = 'internal scratch']
  %s0 = inlined_call_operand.vmem [shape: f32[2,129,5], index: 0, kind: input, shape index: {}]
  %s1 = inlined_call_operand.vmem [shape: f32[10,128], index: 1, kind: input, shape index: {}]
  %s2 = inlined_call_operand.vmem [shape: f32[1,128], index: 2, kind: input, shape index: {}]
  %s3 = inlined_call_operand.hbm [shape: bf16[2,128,128], index: 3, kind: output, shape index: {0}]
  %s4 = inlined_call_operand.hbm [shape: f32[2,1,128], index: 4, kind: output, shape index: {1}]
  %s5 = inlined_call_operand.hbm [shape: f32[2,1,128], index: 5, kind: output, shape index: {2}]
  %6 = xla_tuple %s3, %s4, %s5
  %s7 = sld [smem:[#allocation0]]
  $region65: #{tpu_custom_call.1} parent=0
    _
  %s9 = ssub.s32 1, %s7
  %s10 = scalar_select 0, %s9, %s7
  $region1: #{tpu_custom_call.1} parent=0
    #allocation2 [shape = 'u8[16384]{0}', space=vmem, size = 0x4000, scoped, tag = 'output window, operand 0']
    #allocation3 [shape = 's32[2]{0}', space=sflag, size = 0x8, scoped, tag = 'scoped memory for tpu_custom_call.1']
    #allocation4 [shape = 'u8[1024]{0}', space=vmem, size = 0x400, scoped, tag = 'output window, operand 1']
    #allocation5 [shape = 's32[2]{0}', space=sflag, size = 0x8, scoped, tag = 'scoped memory for tpu_custom_call.1']
    #allocation6 [shape = 'u8[1024]{0}', space=vmem, size = 0x400, scoped, tag = 'output window, operand 2']
    %11 = vsyncpa [#allocation3], 0
    %s12 = scalar_lea.sflag [#allocation3], 1
    %13 = vsyncpa %s12, 0
    %14 = vsyncpa [#allocation5], 0
    %s15 = scalar_lea.sflag [#allocation5], 1
    %16 = vsyncpa %s15, 0
    loop: start=0, step=1, limit=10
    $region2: #{tpu_custom_call.1} parent=1 // loop_pre_header
      _
    $region3: #{tpu_custom_call.1} parent=1 // loop_header
      %s18 = sphi 0, %s22
      %p19 = scmp.ge.s32.totalorder %s18, 10
      %s25 = sphi 0, %s37
      %s26 = sphi 0, %s33
      %s27 = sphi 0, %s25
      %s28 = sphi 0, %s26
      %s29 = sphi 0, %s27
      %s30 = sphi 0, %s28
      %s40 = sphi 0, %s42
      %s43 = sphi 0, %s40
      %s44 = sphi 0, %s43
      %s60 = sphi 0, %s44
      %s64 = sphi 0, %s64
      %s66 = sphi 0, %s64
      %s67 = sphi 0, %s66
      %s81 = sphi 0, %s67
      %s85 = sphi 0, %s85
      %s87 = sphi 0, %s85
      %s88 = sphi 0, %s87
      %s102 = sphi 0, %s88
      %s110 = sphi 0, %s112
      %s113 = sphi 0, %s110
      %s114 = sphi 0, %s113
      %s130 = sphi 0, %s114
      %s136 = sphi 0, %s138
      %s139 = sphi 0, %s136
      %s140 = sphi 0, %s139
      %s156 = sphi 0, %s140
      %s162 = sphi 0, %s164
      %s165 = sphi 0, %s162
      %s166 = sphi 0, %s165
      %s182 = sphi 0, %s166
    $region4: #{tpu_custom_call.1} parent=1 // loop_header_branch
      %21 = sbr.rel (%p19) target = $region8
    $region5: #{tpu_custom_call.1} parent=1 // loop_body
      %s23 = ssub.s32 %s18, 1
      %s24 = ssub.s32 %s18, 2
      %s31 = sadd.s32 1, %s26
      %p32 = scmp.ge.s32.totalorder %s31, 4
      %s33 = scalar_select %p32, 0, %s31
      %s34 = sadd.s32 1, %s25
      %s35 = scalar_select %p32, %s34, %s25
      %p36 = scmp.ge.s32.totalorder %s35, 2
      %s37 = scalar_select %p36, 0, %s35
      %s38 = ssub.s32 %s25, %s37
      %p39 = scmp.eq.s32.totalorder %s38, 0
      %s41 = sadd.s32 %s40, 1
      %s42 = scalar_select %p39, %s40, %s41
      %p45 = pneg %p39
      %p46 = scmp.eq.s32.totalorder %s18, 7
      %p47 = por %p45, %p46
      %p48 = scmp.ne.s32.totalorder %s40, %s43
      %p49 = scmp.eq.s32.totalorder %s18, 0
      %p50 = por %p48, %p49
      %p51 = scmp.ne.s32.totalorder %s40, %s43
      %p52 = scmp.eq.s32.totalorder %s23, 7
      %p53 = por %p51, %p52
      %p54 = scmp.ne.s32.totalorder %s43, %s44
      %p55 = scmp.eq.s32.totalorder %s23, 0
      %p56 = por %p54, %p55
      %p57 = scmp.ne.s32.totalorder %s43, %s44
      %p58 = scmp.eq.s32.totalorder %s24, 7
      %p59 = por %p57, %p58
      %p61 = scmp.ne.s32.totalorder %s44, %s60
      %p62 = scmp.eq.s32.totalorder %s24, 0
      %p63 = por %p61, %p62
      %s65 = sadd.s32 %s64, 1
      %p68 = scmp.eq.s32.totalorder %s18, 7
      %p69 = scmp.ne.s32.totalorder %s64, %s66
      %p70 = scmp.eq.s32.totalorder %s18, 0
      %p71 = por %p69, %p70
      %p72 = scmp.ne.s32.totalorder %s64, %s66
      %p73 = scmp.eq.s32.totalorder %s23, 7
      %p74 = por %p72, %p73
      %p75 = scmp.ne.s32.totalorder %s66, %s67
      %p76 = scmp.eq.s32.totalorder %s23, 0
      %p77 = por %p75, %p76
      %p78 = scmp.ne.s32.totalorder %s66, %s67
      %p79 = scmp.eq.s32.totalorder %s24, 7
      %p80 = por %p78, %p79
      %p82 = scmp.ne.s32.totalorder %s67, %s81
      %p83 = scmp.eq.s32.totalorder %s24, 0
      %p84 = por %p82, %p83
      %s86 = sadd.s32 %s85, 1
      %p89 = scmp.eq.s32.totalorder %s18, 7
      %p90 = scmp.ne.s32.totalorder %s85, %s87
      %p91 = scmp.eq.s32.totalorder %s18, 0
      %p92 = por %p90, %p91
      %p93 = scmp.ne.s32.totalorder %s85, %s87
      %p94 = scmp.eq.s32.totalorder %s23, 7
      %p95 = por %p93, %p94
      %p96 = scmp.ne.s32.totalorder %s87, %s88
      %p97 = scmp.eq.s32.totalorder %s23, 0
      %p98 = por %p96, %p97
      %p99 = scmp.ne.s32.totalorder %s87, %s88
      %p100 = scmp.eq.s32.totalorder %s24, 7
      %p101 = por %p99, %p100
      %p103 = scmp.ne.s32.totalorder %s88, %s102
      %p104 = scmp.eq.s32.totalorder %s24, 0
      %p105 = por %p103, %p104
      %s106 = ssub.s32 %s25, %s37
      %s107 = ssub.s32 %s26, %s33
      %s108 = sor.u32 %s106, %s107
      %p109 = scmp.eq.s32.totalorder %s108, 0
      %s111 = sadd.s32 %s110, 1
      %s112 = scalar_select %p109, %s110, %s111
      %p115 = pneg %p109
      %p116 = scmp.eq.s32.totalorder %s18, 7
      %p117 = por %p115, %p116
      %p118 = scmp.ne.s32.totalorder %s110, %s113
      %p119 = scmp.eq.s32.totalorder %s18, 0
      %p120 = por %p118, %p119
      %p121 = scmp.ne.s32.totalorder %s110, %s113
      %p122 = scmp.eq.s32.totalorder %s23, 7
      %p123 = por %p121, %p122
      %p124 = scmp.ne.s32.totalorder %s113, %s114
      %p125 = scmp.eq.s32.totalorder %s23, 0
      %p126 = por %p124, %p125
      %p127 = scmp.ne.s32.totalorder %s113, %s114
      %p128 = scmp.eq.s32.totalorder %s24, 7
      %p129 = por %p127, %p128
      %p131 = scmp.ne.s32.totalorder %s114, %s130
      %p132 = scmp.eq.s32.totalorder %s24, 0
      %p133 = por %p131, %p132
      %s134 = ssub.s32 %s25, %s37
      %p135 = scmp.eq.s32.totalorder %s134, 0
      %s137 = sadd.s32 %s136, 1
      %s138 = scalar_select %p135, %s136, %s137
      %p141 = pneg %p135
      %p142 = scmp.eq.s32.totalorder %s18, 7
      %p143 = por %p141, %p142
      %p144 = scmp.ne.s32.totalorder %s136, %s139
      %p145 = scmp.eq.s32.totalorder %s18, 0
      %p146 = por %p144, %p145
      %p147 = scmp.ne.s32.totalorder %s136, %s139
      %p148 = scmp.eq.s32.totalorder %s23, 7
      %p149 = por %p147, %p148
      %p150 = scmp.ne.s32.totalorder %s139, %s140
      %p151 = scmp.eq.s32.totalorder %s23, 0
      %p152 = por %p150, %p151
      %p153 = scmp.ne.s32.totalorder %s139, %s140
      %p154 = scmp.eq.s32.totalorder %s24, 7
      %p155 = por %p153, %p154
      %p157 = scmp.ne.s32.totalorder %s140, %s156
      %p158 = scmp.eq.s32.totalorder %s24, 0
      %p159 = por %p157, %p158
      %s160 = ssub.s32 %s25, %s37
      %p161 = scmp.eq.s32.totalorder %s160, 0
      %s163 = sadd.s32 %s162, 1
      %s164 = scalar_select %p161, %s162, %s163
      %p167 = pneg %p161
      %p168 = scmp.eq.s32.totalorder %s18, 7
      %p169 = por %p167, %p168
      %p170 = scmp.ne.s32.totalorder %s162, %s165
      %p171 = scmp.eq.s32.totalorder %s18, 0
      %p172 = por %p170, %p171
      %p173 = scmp.ne.s32.totalorder %s162, %s165
      %p174 = scmp.eq.s32.totalorder %s23, 7
      %p175 = por %p173, %p174
      %p176 = scmp.ne.s32.totalorder %s165, %s166
      %p177 = scmp.eq.s32.totalorder %s23, 0
      %p178 = por %p176, %p177
      %p179 = scmp.ne.s32.totalorder %s165, %s166
      %p180 = scmp.eq.s32.totalorder %s24, 7
      %p181 = por %p179, %p180
      %p183 = scmp.ne.s32.totalorder %s166, %s182
      %p184 = scmp.eq.s32.totalorder %s24, 0
      %p185 = por %p183, %p184
      %p186 = scmp.le.s32.totalorder 1, %s18
      %p187 = scmp.lt.s32.totalorder %s18, 9
      %p188 = pnand %p186, %p187
      %p189 = pneg %p188
      // Predicated region
      $region9: #{tpu_custom_call.1} parent=5 // pred_check
        _
      $region10: #{tpu_custom_call.1} parent=5 // pred_check_branch
        %191 = sbr.rel (%p188) target = $region12
      $region11: #{tpu_custom_call.1} parent=5 // pred_region
        %s192 = ssub.s32 %s18, 1
        // Predicated region
        $region13: #{tpu_custom_call.1} parent=11 // pred_check
          %p193 = pneg %p77
        $region14: #{tpu_custom_call.1} parent=11 // pred_check_branch
          %195 = sbr.rel (%p193) target = $region16
        $region15: #{tpu_custom_call.1} parent=11 // pred_region
          _
        $region16: #{tpu_custom_call.1} parent=11 // pred_fallthru
          _
        // Predicated region
        $region17: #{tpu_custom_call.1} parent=11 // pred_check
          %p196 = pneg %p98
        $region18: #{tpu_custom_call.1} parent=11 // pred_check_branch
          %198 = sbr.rel (%p196) target = $region20
        $region19: #{tpu_custom_call.1} parent=11 // pred_region
          _
        $region20: #{tpu_custom_call.1} parent=11 // pred_fallthru
          _
      $region12: #{tpu_custom_call.1} parent=5 // pred_fallthru
        _
      %p199 = scmp.lt.s32.totalorder %s18, 8
      // Predicated region
      $region21: #{tpu_custom_call.1} parent=5 // pred_check
        %p200 = pneg %p199
      $region22: #{tpu_custom_call.1} parent=5 // pred_check_branch
        %202 = sbr.rel (%p200) target = $region24
      $region23: #{tpu_custom_call.1} parent=5 // pred_region
        // Predicated region
        $region25: #{tpu_custom_call.1} parent=23 // pred_check
          %p203 = pneg %p50
        $region26: #{tpu_custom_call.1} parent=23 // pred_check_branch
          %205 = sbr.rel (%p203) target = $region28
        $region27: #{tpu_custom_call.1} parent=23 // pred_region
          %p206 = scmp.lt.s32.totalorder %s25, 1
          %s207 = scalar_select %p206, %s25, 1
          %s208 = smul.addr %s207, 17
          %s209 = smul.addr %s208, 8
          %s210 = scalar_lea.vmem %s0, %s209
        $region28: #{tpu_custom_call.1} parent=23 // pred_fallthru
          _
      $region24: #{tpu_custom_call.1} parent=5 // pred_fallthru
        _
      %p211 = scmp.le.s32.totalorder 1, %s18
      %p212 = scmp.lt.s32.totalorder %s18, 9
      %p213 = pnand %p211, %p212
      %p214 = pneg %p213
      // Predicated region
      $region29: #{tpu_custom_call.1} parent=5 // pred_check
        _
      $region30: #{tpu_custom_call.1} parent=5 // pred_check_branch
        %216 = sbr.rel (%p213) target = $region32
      $region31: #{tpu_custom_call.1} parent=5 // pred_region
        %s217 = ssub.s32 %s18, 1
        %p218 = scmp.lt.s32.totalorder %s27, 1
        %s219 = scalar_select %p218, %s27, 1
        %s220 = smul.addr %s219, 17
        %s221 = smul.addr %s220, 8
        %s222 = scalar_lea.vmem %s0, %s221
        %p223 = pneg %p56
        %p224 = pneg %p53
        %p225 = pneg %p77
        %p226 = pneg %p74
        %p227 = pneg %p98
        %p228 = pneg %p95
        %p229 = pneg %p126
        %p230 = pneg %p123
        %s231 = sand.u32 %s113, 1
        %s232 = scalar_lea.sflag [#allocation3], %s231
        %s233 = sand.u32 %s113, 1
        %s234 = smul.addr %s233, 16
        %s235 = scalar_lea.vmem [#allocation2], %s234
        %p236 = pneg %p152
        %p237 = pneg %p149
        %s238 = sand.u32 %s23, 1
        %s239 = scalar_lea.sflag [#allocation5], %s238
        %s240 = sand.u32 %s139, 1
        %s241 = scalar_lea.vmem [#allocation4], %s240
        %p242 = pneg %p178
        %p243 = pneg %p175
        %s244 = sand.u32 %s23, 1
        %s245 = scalar_lea.sflag [#allocation5], %s244
        %s246 = sand.u32 %s165, 1
        %s247 = scalar_lea.vmem [#allocation6], %s246
        %p248 = scmp.lt.s32.totalorder %s27, 1
        %s249 = scalar_select %p248, %s27, 1
        %s250 = smul.addr %s249, 17
        %s251 = smul.addr %s250, 8
        %s252 = scalar_lea.vmem %s0, %s251
        %s253 = smul.u32 4, %s28
        %s254 = smul.u32 %s28, 32
        %s255 = scalar_lea.vmem %s252, %s254
        %v256 = vld [vmem:[%s255] sm:$0xff]
        %v257 = vld [vmem:[%s255 + $0x8] sm:$0xff]
        %v258 = vld [vmem:[%s255 + $0x10] sm:$0xff]
        %v259 = vld [vmem:[%s255 + $0x18] sm:$0xff]
        %v260 = vld [vmem:[%s1] sm:$0x1]
        %262 = vset.pattern.permute.xlu0 0
        %263 = vperm.xlu0 %262, %v256
        %v264 = vpop.permute.xlu0 %263
        %267 = vset.pattern.permute.xlu0 0
        %268 = vperm.xlu0 %267, %v257
        %v269 = vpop.permute.xlu0 %268
        %272 = vset.pattern.permute.xlu0 0
        %273 = vperm.xlu0 %272, %v258
        %v274 = vpop.permute.xlu0 %273
        %277 = vset.pattern.permute.xlu0 0
        %278 = vperm.xlu0 %277, %v259
        %v279 = vpop.permute.xlu0 %278
        %v281 = vperm.slane %v260, 0
        %v282 = vmul.f32 %v264, %v281
        %v283 = vmul.f32 %v269, %v281
        %v284 = vmul.f32 %v274, %v281
        %v285 = vmul.f32 %v279, %v281
        %v286 = vadd.f32 %v282, 0.0
        %v287 = vadd.f32 %v283, 0.0
        %v288 = vadd.f32 %v284, 0.0
        %v289 = vadd.f32 %v285, 0.0
        %v290 = vld [vmem:[%s1 + $0x1] sm:$0x1]
        %291 = vset.pattern.permute.xlu0 1
        %292 = vperm.xlu0 %291, %v256
        %v293 = vpop.permute.xlu0 %292
        %295 = vset.pattern.permute.xlu0 1
        %296 = vperm.xlu0 %295, %v257
        %v297 = vpop.permute.xlu0 %296
        %299 = vset.pattern.permute.xlu0 1
        %300 = vperm.xlu0 %299, %v258
        %v301 = vpop.permute.xlu0 %300
        %303 = vset.pattern.permute.xlu0 1
        %304 = vperm.xlu0 %303, %v259
        %v305 = vpop.permute.xlu0 %304
        %v307 = vperm.slane %v290, 0
        %v308 = vmul.f32 %v293, %v307
        %v309 = vmul.f32 %v297, %v307
        %v310 = vmul.f32 %v301, %v307
        %v311 = vmul.f32 %v305, %v307
        %v312 = vadd.f32 %v286, %v308
        %v313 = vadd.f32 %v287, %v309
        %v314 = vadd.f32 %v288, %v310
        %v315 = vadd.f32 %v289, %v311
        %v316 = vld [vmem:[%s1 + $0x2] sm:$0x1]
        %317 = vset.pattern.permute.xlu0 2
        %318 = vperm.xlu0 %317, %v256
        %v319 = vpop.permute.xlu0 %318
        %321 = vset.pattern.permute.xlu0 2
        %322 = vperm.xlu0 %321, %v257
        %v323 = vpop.permute.xlu0 %322
        %325 = vset.pattern.permute.xlu0 2
        %326 = vperm.xlu0 %325, %v258
        %v327 = vpop.permute.xlu0 %326
        %329 = vset.pattern.permute.xlu0 2
        %330 = vperm.xlu0 %329, %v259
        %v331 = vpop.permute.xlu0 %330
        %v333 = vperm.slane %v316, 0
        %v334 = vmul.f32 %v319, %v333
        %v335 = vmul.f32 %v323, %v333
        %v336 = vmul.f32 %v327, %v333
        %v337 = vmul.f32 %v331, %v333
        %v338 = vadd.f32 %v312, %v334
        %v339 = vadd.f32 %v313, %v335
        %v340 = vadd.f32 %v314, %v336
        %v341 = vadd.f32 %v315, %v337
        %v342 = vld [vmem:[%s1 + $0x3] sm:$0x1]
        %343 = vset.pattern.permute.xlu0 3
        %344 = vperm.xlu0 %343, %v256
        %v345 = vpop.permute.xlu0 %344
        %347 = vset.pattern.permute.xlu0 3
        %348 = vperm.xlu0 %347, %v257
        %v349 = vpop.permute.xlu0 %348
        %351 = vset.pattern.permute.xlu0 3
        %352 = vperm.xlu0 %351, %v258
        %v353 = vpop.permute.xlu0 %352
        %355 = vset.pattern.permute.xlu0 3
        %356 = vperm.xlu0 %355, %v259
        %v357 = vpop.permute.xlu0 %356
        %v359 = vperm.slane %v342, 0
        %v360 = vmul.f32 %v345, %v359
        %v361 = vmul.f32 %v349, %v359
        %v362 = vmul.f32 %v353, %v359
        %v363 = vmul.f32 %v357, %v359
        %v364 = vadd.f32 %v338, %v360
        %v365 = vadd.f32 %v339, %v361
        %v366 = vadd.f32 %v340, %v362
        %v367 = vadd.f32 %v341, %v363
        %v368 = vld [vmem:[%s1 + $0x4] sm:$0x1]
        %369 = vset.pattern.permute.xlu0 4
        %370 = vperm.xlu0 %369, %v256
        %v371 = vpop.permute.xlu0 %370
        %373 = vset.pattern.permute.xlu0 4
        %374 = vperm.xlu0 %373, %v257
        %v375 = vpop.permute.xlu0 %374
        %377 = vset.pattern.permute.xlu0 4
        %378 = vperm.xlu0 %377, %v258
        %v379 = vpop.permute.xlu0 %378
        %381 = vset.pattern.permute.xlu0 4
        %382 = vperm.xlu0 %381, %v259
        %v383 = vpop.permute.xlu0 %382
        %v385 = vperm.slane %v368, 0
        %v386 = vmul.f32 %v371, %v385
        %v387 = vmul.f32 %v375, %v385
        %v388 = vmul.f32 %v379, %v385
        %v389 = vmul.f32 %v383, %v385
        %v390 = vadd.f32 %v364, %v386
        %v391 = vadd.f32 %v365, %v387
        %v392 = vadd.f32 %v366, %v388
        %v393 = vadd.f32 %v367, %v389
        %s394 = sadd.s32 %s254, 1
        %s395 = scalar_lea.vmem %s252, %s394
        %v396 = vld [vmem:[%s395] sm:$0xff]
        %v397 = vld [vmem:[%s395 + $0x8] sm:$0xff]
        %v398 = vld [vmem:[%s395 + $0x10] sm:$0xff]
        %v399 = vld [vmem:[%s395 + $0x18] sm:$0xff]
        %v400 = vld [vmem:[%s1 + $0x5] sm:$0x1]
        %402 = vset.pattern.permute.xlu0 0
        %403 = vperm.xlu0 %402, %v396
        %v404 = vpop.permute.xlu0 %403
        %407 = vset.pattern.permute.xlu0 0
        %408 = vperm.xlu0 %407, %v397
        %v409 = vpop.permute.xlu0 %408
        %412 = vset.pattern.permute.xlu0 0
        %413 = vperm.xlu0 %412, %v398
        %v414 = vpop.permute.xlu0 %413
        %417 = vset.pattern.permute.xlu0 0
        %418 = vperm.xlu0 %417, %v399
        %v419 = vpop.permute.xlu0 %418
        %v421 = vperm.slane %v400, 0
        %v422 = vmul.f32 %v404, %v421
        %v423 = vmul.f32 %v409, %v421
        %v424 = vmul.f32 %v414, %v421
        %v425 = vmul.f32 %v419, %v421
        %v426 = vadd.f32 %v390, %v422
        %v427 = vadd.f32 %v391, %v423
        %v428 = vadd.f32 %v392, %v424
        %v429 = vadd.f32 %v393, %v425
        %v430 = vld [vmem:[%s1 + $0x6] sm:$0x1]
        %431 = vset.pattern.permute.xlu0 1
        %432 = vperm.xlu0 %431, %v396
        %v433 = vpop.permute.xlu0 %432
        %435 = vset.pattern.permute.xlu0 1
        %436 = vperm.xlu0 %435, %v397
        %v437 = vpop.permute.xlu0 %436
        %439 = vset.pattern.permute.xlu0 1
        %440 = vperm.xlu0 %439, %v398
        %v441 = vpop.permute.xlu0 %440
        %443 = vset.pattern.permute.xlu0 1
        %444 = vperm.xlu0 %443, %v399
        %v445 = vpop.permute.xlu0 %444
        %v447 = vperm.slane %v430, 0
        %v448 = vmul.f32 %v433, %v447
        %v449 = vmul.f32 %v437, %v447
        %v450 = vmul.f32 %v441, %v447
        %v451 = vmul.f32 %v445, %v447
        %v452 = vadd.f32 %v426, %v448
        %v453 = vadd.f32 %v427, %v449
        %v454 = vadd.f32 %v428, %v450
        %v455 = vadd.f32 %v429, %v451
        %v456 = vld [vmem:[%s1 + $0x7] sm:$0x1]
        %457 = vset.pattern.permute.xlu0 2
        %458 = vperm.xlu0 %457, %v396
        %v459 = vpop.permute.xlu0 %458
        %461 = vset.pattern.permute.xlu0 2
        %462 = vperm.xlu0 %461, %v397
        %v463 = vpop.permute.xlu0 %462
        %465 = vset.pattern.permute.xlu0 2
        %466 = vperm.xlu0 %465, %v398
        %v467 = vpop.permute.xlu0 %466
        %469 = vset.pattern.permute.xlu0 2
        %470 = vperm.xlu0 %469, %v399
        %v471 = vpop.permute.xlu0 %470
        %v473 = vperm.slane %v456, 0
        %v474 = vmul.f32 %v459, %v473
        %v475 = vmul.f32 %v463, %v473
        %v476 = vmul.f32 %v467, %v473
        %v477 = vmul.f32 %v471, %v473
        %v478 = vadd.f32 %v452, %v474
        %v479 = vadd.f32 %v453, %v475
        %v480 = vadd.f32 %v454, %v476
        %v481 = vadd.f32 %v455, %v477
        %v482 = vld [vmem:[%s1 + $0x8] sm:$0x1]
        %483 = vset.pattern.permute.xlu0 3
        %484 = vperm.xlu0 %483, %v396
        %v485 = vpop.permute.xlu0 %484
        %487 = vset.pattern.permute.xlu0 3
        %488 = vperm.xlu0 %487, %v397
        %v489 = vpop.permute.xlu0 %488
        %491 = vset.pattern.permute.xlu0 3
        %492 = vperm.xlu0 %491, %v398
        %v493 = vpop.permute.xlu0 %492
        %495 = vset.pattern.permute.xlu0 3
        %496 = vperm.xlu0 %495, %v399
        %v497 = vpop.permute.xlu0 %496
        %v499 = vperm.slane %v482, 0
        %v500 = vmul.f32 %v485, %v499
        %v501 = vmul.f32 %v489, %v499
        %v502 = vmul.f32 %v493, %v499
        %v503 = vmul.f32 %v497, %v499
        %v504 = vadd.f32 %v478, %v500
        %v505 = vadd.f32 %v479, %v501
        %v506 = vadd.f32 %v480, %v502
        %v507 = vadd.f32 %v481, %v503
        %v508 = vld [vmem:[%s1 + $0x9] sm:$0x1]
        %509 = vset.pattern.permute.xlu0 4
        %510 = vperm.xlu0 %509, %v396
        %v511 = vpop.permute.xlu0 %510
        %513 = vset.pattern.permute.xlu0 4
        %514 = vperm.xlu0 %513, %v397
        %v515 = vpop.permute.xlu0 %514
        %517 = vset.pattern.permute.xlu0 4
        %518 = vperm.xlu0 %517, %v398
        %v519 = vpop.permute.xlu0 %518
        %521 = vset.pattern.permute.xlu0 4
        %522 = vperm.xlu0 %521, %v399
        %v523 = vpop.permute.xlu0 %522
        %v525 = vperm.slane %v508, 0
        %v526 = vmul.f32 %v511, %v525
        %v527 = vmul.f32 %v515, %v525
        %v528 = vmul.f32 %v519, %v525
        %v529 = vmul.f32 %v523, %v525
        %v530 = vadd.f32 %v504, %v526
        %v531 = vadd.f32 %v505, %v527
        %v532 = vadd.f32 %v506, %v528
        %v533 = vadd.f32 %v507, %v529
        %v534 = vld [vmem:[%s2] sm:$0x1]
        %v536 = vperm.slane %v534, 0
        %v538 = vadd.f32 %v530, %v536
        %v539 = vadd.f32 %v531, %v536
        %v540 = vadd.f32 %v532, %v536
        %v541 = vadd.f32 %v533, %v536
        %v542 = vlaneseq
        %v543 = vshrl.u32 %v542, 7
        %v544 = vadd.s32 %v543, 8
        %v545 = vadd.s32 %v543, 16
        %v546 = vadd.s32 %v543, 24
        %v547 = vstv %s254
        %v548 = vadd.s32 %v547, %v543
        %v549 = vadd.s32 %v547, %v544
        %v550 = vadd.s32 %v547, %v545
        %v551 = vadd.s32 %v547, %v546
        %vm552 = vcmp.lt.s32.totalorder %v548, 99
        %vm553 = vcmp.lt.s32.totalorder %v549, 99
        %vm554 = vcmp.lt.s32.totalorder %v550, 99
        %vm555 = vcmp.lt.s32.totalorder %v551, 99
        %v556 = vsel %vm552, 1, 0
        %v557 = vsel %vm553, 1, 0
        %v558 = vsel %vm554, 1, 0
        %v559 = vsel %vm555, 1, 0
        %vm560 = vcmp.eq.s32.totalorder %v556, 1
        %vm561 = vcmp.eq.s32.totalorder %v557, 1
        %vm562 = vcmp.eq.s32.totalorder %v558, 1
        %vm563 = vcmp.eq.s32.totalorder %v559, 1
        %v564 = vsel %vm560, %v538, 0.0
        %v565 = vsel %vm561, %v539, 0.0
        %v566 = vsel %vm562, %v540, 0.0
        %v567 = vsel %vm563, %v541, 0.0
        %v568 = vpack.c.bf16 %v564, %v564
        %v569 = vpack.c.bf16 %v565, %v565
        %v570 = vpack.c.bf16 %v566, %v566
        %v571 = vpack.c.bf16 %v567, %v567
        %572 = vst [vmem:[%s235] sm:$0xf] %v568
        %573 = vst [vmem:[%s235 + $0x4] sm:$0xf] %v569
        %574 = vst [vmem:[%s235 + $0x8] sm:$0xf] %v570
        %575 = vst [vmem:[%s235 + $0xc] sm:$0xf] %v571
        %p576 = scmp.eq.s32.totalorder %s28, 0
        // Predicated region
        $region33: #{tpu_custom_call.1} parent=31 // pred_check
          %p577 = pneg %p576
        $region34: #{tpu_custom_call.1} parent=31 // pred_check_branch
          %579 = sbr.rel (%p577) target = $region36
        $region35: #{tpu_custom_call.1} parent=31 // pred_region
          %580 = vst [vmem:[%s241] sm:$0x1] 0.0
          %581 = vst [vmem:[%s247] sm:$0x1] 0.0
        $region36: #{tpu_custom_call.1} parent=31 // pred_fallthru
          _
        %v582 = vld [vmem:[%s241] sm:$0x1]
        %v583 = vadd.f32 %v564, %v565
        %v584 = vadd.f32 %v583, %v566
        %v585 = vadd.f32 %v584, %v567
        %v586 = vrot.slane %v585, 4
        %v587 = vadd.f32 %v585, %v586
        %v588 = vrot.slane %v587, 2
        %v589 = vadd.f32 %v587, %v588
        %v590 = vrot.slane %v589, 1
        %v591 = vadd.f32 %v589, %v590
        %v592 = vadd.f32 %v582, %v591
        %593 = vst [vmem:[%s241] sm:$0x1] %v592
        %v594 = vld [vmem:[%s247] sm:$0x1]
        %v595 = vmul.f32 %v564, %v564
        %v596 = vmul.f32 %v565, %v565
        %v597 = vmul.f32 %v566, %v566
        %v598 = vmul.f32 %v567, %v567
        %v599 = vadd.f32 %v595, %v596
        %v600 = vadd.f32 %v599, %v597
        %v601 = vadd.f32 %v600, %v598
        %v602 = vrot.slane %v601, 4
        %v603 = vadd.f32 %v601, %v602
        %v604 = vrot.slane %v603, 2
        %v605 = vadd.f32 %v603, %v604
        %v606 = vrot.slane %v605, 1
        %v607 = vadd.f32 %v605, %v606
        %v608 = vadd.f32 %v594, %v607
        %609 = vst [vmem:[%s247] sm:$0x1] %v608
        %s610 = sand.u32 %s113, 1
        %s611 = scalar_lea.sflag [#allocation3], %s610
        %s612 = sand.u32 %s113, 1
        %s613 = smul.addr %s612, 16
        %s614 = scalar_lea.vmem [#allocation2], %s613
        %s615 = sand.u32 %s23, 1
        %s616 = scalar_lea.sflag [#allocation5], %s615
        %s617 = sand.u32 %s139, 1
        %s618 = scalar_lea.vmem [#allocation4], %s617
        %s619 = sand.u32 %s23, 1
        %s620 = scalar_lea.sflag [#allocation5], %s619
        %s621 = sand.u32 %s165, 1
        %s622 = scalar_lea.vmem [#allocation6], %s621
        // Predicated region
        $region37: #{tpu_custom_call.1} parent=31 // pred_check
          %p623 = pneg %p123
        $region38: #{tpu_custom_call.1} parent=31 // pred_check_branch
          %625 = sbr.rel (%p623) target = $region40
        $region39: #{tpu_custom_call.1} parent=31 // pred_region
          %s626 = smul.u32 4, %s28
          %628 = vsyncadd %s611, 0
          %s629 = smul.addr %s27, 16
          %s630 = sadd.s32 %s626, %s629
          %s631 = smul.addr %s630, 4
          %s632 = scalar_lea.hbm %s3, %s631
          %s633 = sshll.u32 %s614, 4
          %s634 = int_to_ptr.vmem [resolvable:$true] %s633
          %s635 = sshll.u32 %s632, 4
          %s636 = int_to_ptr.hbm [resolvable:$true] %s635
          %641 = dma.vmem_to_hbm [thread:$0]  %s634, 256, %s636, %s611, 64, 64, 4
        $region40: #{tpu_custom_call.1} parent=31 // pred_fallthru
          _
        // Predicated region
        $region41: #{tpu_custom_call.1} parent=31 // pred_check
          %p642 = pneg %p149
        $region42: #{tpu_custom_call.1} parent=31 // pred_check_branch
          %644 = sbr.rel (%p642) target = $region44
        $region43: #{tpu_custom_call.1} parent=31 // pred_region
          %646 = vsyncadd %s616, 0
          %s647 = scalar_lea.hbm %s4, %s27
          %s649 = sshll.u32 %s618, 4
          %s650 = int_to_ptr.vmem [resolvable:$true] %s649
          %s651 = sshll.u32 %s647, 4
          %s652 = int_to_ptr.hbm [resolvable:$true] %s651
          %654 = dma.vmem_to_hbm [thread:$0]  %s650, 16, %s652, %s616
        $region44: #{tpu_custom_call.1} parent=31 // pred_fallthru
          _
        // Predicated region
        $region45: #{tpu_custom_call.1} parent=31 // pred_check
          %p655 = pneg %p175
        $region46: #{tpu_custom_call.1} parent=31 // pred_check_branch
          %657 = sbr.rel (%p655) target = $region48
        $region47: #{tpu_custom_call.1} parent=31 // pred_region
          %659 = vsyncadd %s620, 0
          %s660 = scalar_lea.hbm %s5, %s27
          %s662 = sshll.u32 %s622, 4
          %s663 = int_to_ptr.vmem [resolvable:$true] %s662
          %s664 = sshll.u32 %s660, 4
          %s665 = int_to_ptr.hbm [resolvable:$true] %s664
          %667 = dma.vmem_to_hbm [thread:$0]  %s663, 16, %s665, %s620
        $region48: #{tpu_custom_call.1} parent=31 // pred_fallthru
          _
      $region32: #{tpu_custom_call.1} parent=5 // pred_fallthru
        _
      %p668 = scmp.le.s32.totalorder 2, %s18
      // Predicated region
      $region49: #{tpu_custom_call.1} parent=5 // pred_check
        %p669 = pneg %p668
      $region50: #{tpu_custom_call.1} parent=5 // pred_check_branch
        %671 = sbr.rel (%p669) target = $region52
      $region51: #{tpu_custom_call.1} parent=5 // pred_region
        %s672 = ssub.s32 %s18, 2
        // Predicated region
        $region53: #{tpu_custom_call.1} parent=51 // pred_check
          %p673 = pneg %p129
        $region54: #{tpu_custom_call.1} parent=51 // pred_check_branch
          %675 = sbr.rel (%p673) target = $region56
        $region55: #{tpu_custom_call.1} parent=51 // pred_region
          %s676 = sand.u32 %s114, 1
          %s677 = scalar_lea.sflag [#allocation3], %s676
          %s678 = sand.u32 %s114, 1
          %s679 = smul.addr %s678, 16
          %s680 = scalar_lea.vmem [#allocation2], %s679
          %682 = dma.done %s677, 256
        $region56: #{tpu_custom_call.1} parent=51 // pred_fallthru
          _
        // Predicated region
        $region57: #{tpu_custom_call.1} parent=51 // pred_check
          %p683 = pneg %p155
        $region58: #{tpu_custom_call.1} parent=51 // pred_check_branch
          %685 = sbr.rel (%p683) target = $region60
        $region59: #{tpu_custom_call.1} parent=51 // pred_region
          %s686 = sand.u32 %s24, 1
          %s687 = scalar_lea.sflag [#allocation5], %s686
          %s688 = sand.u32 %s140, 1
          %s689 = scalar_lea.vmem [#allocation4], %s688
          %691 = dma.done %s687, 16
        $region60: #{tpu_custom_call.1} parent=51 // pred_fallthru
          _
        // Predicated region
        $region61: #{tpu_custom_call.1} parent=51 // pred_check
          %p692 = pneg %p181
        $region62: #{tpu_custom_call.1} parent=51 // pred_check_branch
          %694 = sbr.rel (%p692) target = $region64
        $region63: #{tpu_custom_call.1} parent=51 // pred_region
          %s695 = sand.u32 %s24, 1
          %s696 = scalar_lea.sflag [#allocation5], %s695
          %s697 = sand.u32 %s166, 1
          %s698 = scalar_lea.vmem [#allocation6], %s697
          %700 = dma.done %s696, 16
        $region64: #{tpu_custom_call.1} parent=51 // pred_fallthru
          _
      $region52: #{tpu_custom_call.1} parent=5 // pred_fallthru
        _
    $region6: #{tpu_custom_call.1} parent=1 // loop_footer
      %s22 = sadd.s32 1, %s18
    $region7: #{tpu_custom_call.1} parent=1 // loop_footer_branch
      %17 = sbr.rel target = $region3
    $region8: #{tpu_custom_call.1} parent=1 // loop_exit
      _
    %701 = vsyncpa [#allocation3], 1
    %s702 = scalar_lea.sflag [#allocation3], 1
    %703 = vsyncpa %s702, 1
    %704 = vsyncpa [#allocation5], 1
    %s705 = scalar_lea.sflag [#allocation5], 1
    %706 = vsyncpa %s705, 1

</llo_original>
